<compile_context>
chip_gen: v7x
topology: tpu7x:2x2x1
jax: 0.10.0
libtpu: 0.0.40
codegen_flags: <defaults>
</compile_context>

<pallas_src>
import jax
import jax.numpy as jnp
from jax.experimental import pallas as pl
from jax.experimental.pallas import tpu as pltpu


FEAT_PAD = 128       # hidden-layer width padding (all hidden widths <= 128)
NUM_LAYERS = 5


def _round_up(x, m):
    return ((x + m - 1) // m) * m


def _mlp_kernel(x_ref, w1_ref, w_ref, b_ref, out_ref):
    """One batch tile of the 5-layer MLP, transposed dataflow, fully in VMEM.

    x_ref   : (F_PAD, TB)    bf16  x^T tile (feature rows, batch columns)
    w1_ref  : (128, F_PAD)   bf16  W1^T, zero-padded
    w_ref   : (4, 128, 128)  bf16  W2^T..W5^T, zero-padded (W5^T = row 0 of slab 3)
    b_ref   : (5, 128, 1)    f32   zero-padded biases (column vectors)
    out_ref : (1, TB)        f32   lane-dense sigmoid outputs for this tile
    """
    # Layer 1: ReLU(W1^T @ x^T + b1).  bf16 x bf16 on the MXU, f32 accumulate;
    # contraction length is the (small) true feature pad, not 128.
    z = jnp.dot(w1_ref[...], x_ref[...], preferred_element_type=jnp.float32)
    h = jnp.maximum(z + b_ref[0], 0.0).astype(jnp.bfloat16)          # (128, TB)

    # Layers 2..4: same pattern, 128x128 MXU tiles, zero transposes anywhere.
    for l in range(3):
        z = jnp.dot(w_ref[l], h, preferred_element_type=jnp.float32)
        h = jnp.maximum(z + b_ref[l + 1], 0.0).astype(jnp.bfloat16)

    # Layer 5: W5^T lives in row 0 of slab 3, so each row's scalar output lands
    # on the lane axis -> unmasked lane-dense (1, TB) store.
    w5 = w_ref[3][0:8, :]                                             # (8,128); only row 0 nonzero
    z5 = jnp.dot(w5, h, preferred_element_type=jnp.float32)          # (8, TB)
    z5 = z5[0:1, :] + b_ref[4][0:1, 0:1]                              # (1, TB)

    # sigmoid(z) == 0.5 * tanh(z/2) + 0.5 : one EUP transcendental, f32.
    out_ref[...] = 0.5 * jnp.tanh(0.5 * z5) + 0.5


def pack_params(params, f_pad):
    """Pack per-layer (W_(in,out), b_(out,)) into transposed, padded slabs."""
    assert len(params) == NUM_LAYERS
    w1, b1 = params[0]
    fin1, fout1 = w1.shape
    assert fout1 <= FEAT_PAD and fin1 <= f_pad
    for w, _ in params[1:]:
        assert w.shape[0] <= FEAT_PAD and w.shape[1] <= FEAT_PAD

    w1t = jnp.zeros((FEAT_PAD, f_pad), jnp.float32).at[:fout1, :fin1].set(w1.T)
    w_slab = jnp.zeros((NUM_LAYERS - 1, FEAT_PAD, FEAT_PAD), jnp.float32)
    b_slab = jnp.zeros((NUM_LAYERS, FEAT_PAD, 1), jnp.float32)
    b_slab = b_slab.at[0, :fout1, 0].set(jnp.reshape(b1, (-1,)))
    for l in range(1, NUM_LAYERS):
        w, b = params[l]
        fi, fo = w.shape
        w_slab = w_slab.at[l - 1, :fo, :fi].set(w.T)      # store W^T
        b_slab = b_slab.at[l, :fo, 0].set(jnp.reshape(b, (-1,)))
    return w1t.astype(jnp.bfloat16), w_slab.astype(jnp.bfloat16), b_slab


def strong_branch_net(x, params, *, block_batch=4096):
    """Forward pass. x: (B, num_inputs) f32; params: 5 pairs (W_(in,out), b_(out,))."""
    B, F = x.shape
    f_pad = _round_up(F, 32)          # small HBM pad only; 128-lane pad stays in VMEM
    w1t, w_slab, b_slab = pack_params(params, f_pad)

    # Batch tile: multiple of 128 (lane-dense output block).  Large tiles
    # amortize the ~0.35 us per-grid-step overhead; cap so there are still
    # >= 4 grid steps at large B (>= 2 per v7x TensorCore, keeps pipelining).
    b_128 = _round_up(B, 128)
    tb = max(128, min(_round_up(block_batch, 128), b_128))
    tb = min(tb, max(128, _round_up(b_128 // 4, 128)))
    b_pad = _round_up(B, tb)
    n_tiles = b_pad // tb

    # Fused pad + cast + transpose: x^T as (f_pad, b_pad) bf16, zero-padded
    # (pad lanes/rows are explicit zeros -> first matmul is exact garbage-free).
    x_padT = (jnp.zeros((f_pad, b_pad), jnp.bfloat16)
              .at[:F, :B].set(x.astype(jnp.bfloat16).T))

    dims = [F] + [int(w.shape[1]) for w, _ in params]
    flops = 2 * B * sum(dims[i] * dims[i + 1] for i in range(len(dims) - 1))
    bytes_accessed = int(x_padT.size * 2 + w1t.size * 2 + w_slab.size * 2
                         + b_slab.size * 4 + b_pad * 4)

    out = pl.pallas_call(
        _mlp_kernel,
        out_shape=jax.ShapeDtypeStruct((1, b_pad), jnp.float32),
        grid=(n_tiles,),
        in_specs=[
            # x^T: one batch tile per grid step (auto double-buffered).
            pl.BlockSpec((f_pad, tb), lambda i: (0, i)),
            # weight / bias slabs: constant block index -> fetched once, stay
            # VMEM-resident across all grid steps.
            pl.BlockSpec((FEAT_PAD, f_pad), lambda i: (0, 0)),
            pl.BlockSpec((NUM_LAYERS - 1, FEAT_PAD, FEAT_PAD), lambda i: (0, 0, 0)),
            pl.BlockSpec((NUM_LAYERS, FEAT_PAD, 1), lambda i: (0, 0, 0)),
        ],
        # lane-dense output: tb (multiple of 128) scalars per tile on the lane axis.
        out_specs=pl.BlockSpec((1, tb), lambda i: (0, i)),
        compiler_params=pltpu.CompilerParams(
            dimension_semantics=("parallel",)),       # megacore sharding on v7x
        cost_estimate=pl.CostEstimate(
            flops=flops, transcendentals=b_pad, bytes_accessed=bytes_accessed),
    )(x_padT, w1t, w_slab, b_slab)

    return out[0, :B].reshape(B, 1)


def init_params(key, num_inputs, hidden_nodes=(30, 50, 50, 10)):
    """PyTorch nn.Linear-style init: U(-1/sqrt(fan_in), 1/sqrt(fan_in)).
    Weights stored as (in, out) (transposed vs torch), biases as (out,)."""
    dims = [num_inputs, *hidden_nodes, 1]
    params = []
    for i in range(len(dims) - 1):
        fan_in, fan_out = dims[i], dims[i + 1]
        key, kw, kb = jax.random.split(key, 3)
        bound = 1.0 / jnp.sqrt(jnp.float32(fan_in))
        w = jax.random.uniform(kw, (fan_in, fan_out), jnp.float32, -bound, bound)
        b = jax.random.uniform(kb, (fan_out,), jnp.float32, -bound, bound)
        params.append((w, b))
    return params


def reference_forward(x, params, *, quantize=False):
    """Pure-JAX reference.  quantize=True mirrors the kernel's bf16 operand /
    per-layer activation rounding so the tight check is apples-to-apples."""
    def q(a):
        return a.astype(jnp.bfloat16).astype(jnp.float32) if quantize else a
    h = q(x)
    for i, (w, b) in enumerate(params):
        z = h @ q(w) + b.reshape(1, -1)
        if i < len(params) - 1:
            h = q(jnp.maximum(z, 0.0))
        else:
            h = jax.nn.sigmoid(z)
    return h


if __name__ == "__main__":
    key = jax.random.PRNGKey(0)
    num_inputs = 20
    kx, kp = jax.random.split(key)
    params = init_params(kp, num_inputs)

    # batch=8 exercises the single-tile path; batch=300 exercises a 3-step grid
    # (tb=128, b_pad=384) including the lane-dense tiled output writeback.
    for batch in (8, 300):
        x = jax.random.normal(jax.random.fold_in(kx, batch),
                              (batch, num_inputs), jnp.float32)
        out = jax.block_until_ready(strong_branch_net(x, params))
        assert out.shape == (batch, 1)

        ref_f32 = reference_forward(x, params)                    # full f32 reference
        ref_q = reference_forward(x, params, quantize=True)       # bf16-quantized reference
        assert float(jnp.max(jnp.abs(out - ref_q))) < 1e-3, (batch, out, ref_q)
        assert float(jnp.max(jnp.abs(out - ref_f32))) < 2e-2, (batch, out, ref_f32)

    print("KERNEL_OK")
</pallas_src>

<mosaic_0001>
module attributes {stable_mosaic.version = 11 : i64} {
  func.func @_mlp_kernel(%arg0: i32, %arg1: memref<32x128xbf16, #tpu.memory_space<vmem>>, %arg2: memref<128x32xbf16, #tpu.memory_space<vmem>>, %arg3: memref<4x128x128xbf16, #tpu.memory_space<vmem>>, %arg4: memref<5x128x1xf32, #tpu.memory_space<vmem>>, %arg5: memref<1x128xf32, #tpu.memory_space<vmem>>) attributes {dimension_semantics = [#tpu.dimension_semantics<parallel>], iteration_bounds = array<i64: 1>, scalar_prefetch = 0 : i64, scratch_operands = 0 : i64, tpu.core_type = #tpu.core_type<tc>, window_params = [{transform_indices = @transform_0, window_bounds = array<i64: 32, 128>}, {pipeline_mode = #tpu.pipeline_mode<synchronous>, transform_indices = @transform_1, window_bounds = array<i64: 128, 32>}, {pipeline_mode = #tpu.pipeline_mode<synchronous>, transform_indices = @transform_2, window_bounds = array<i64: 4, 128, 128>}, {pipeline_mode = #tpu.pipeline_mode<synchronous>, transform_indices = @transform_3, window_bounds = array<i64: 5, 128, 1>}, {transform_indices = @transform_4, window_bounds = array<i64: 1, 128>}]} {
    %c0 = arith.constant 0 : index
    %c0_0 = arith.constant 0 : index
    %0 = vector.load %arg2[%c0, %c0_0] : memref<128x32xbf16, #tpu.memory_space<vmem>>, vector<128x32xbf16>
    %c0_1 = arith.constant 0 : index
    %c0_2 = arith.constant 0 : index
    %1 = vector.load %arg1[%c0_1, %c0_2] : memref<32x128xbf16, #tpu.memory_space<vmem>>, vector<32x128xbf16>
    %cst = arith.constant dense<0.000000e+00> : vector<128x128xf32>
    %2 = tpu.matmul %0, %1, %cst {dimension_numbers = #tpu.dot_dimension_numbers<[1], [0], [0], [1], [0, 0, 1, 1], [], []>} : vector<128x32xbf16>, vector<32x128xbf16>, vector<128x128xf32> -> vector<128x128xf32>
    %c0_3 = arith.constant 0 : index
    %c0_4 = arith.constant 0 : index
    %c0_5 = arith.constant 0 : index
    %3 = vector.load %arg4[%c0_3, %c0_4, %c0_5] : memref<5x128x1xf32, #tpu.memory_space<vmem>>, vector<1x128x1xf32>
    %4 = vector.shape_cast %3 : vector<1x128x1xf32> to vector<128x1xf32>
    %5 = vector.broadcast %4 : vector<128x1xf32> to vector<128x128xf32>
    %6 = arith.addf %2, %5 : vector<128x128xf32>
    %cst_6 = arith.constant 0.000000e+00 : f32
    %7 = vector.broadcast %cst_6 : f32 to vector<128x128xf32>
    %8 = arith.maximumf %6, %7 : vector<128x128xf32>
    %9 = arith.truncf %8 : vector<128x128xf32> to vector<128x128xbf16>
    %c0_7 = arith.constant 0 : index
    %c0_8 = arith.constant 0 : index
    %c0_9 = arith.constant 0 : index
    %10 = vector.load %arg3[%c0_7, %c0_8, %c0_9] : memref<4x128x128xbf16, #tpu.memory_space<vmem>>, vector<1x128x128xbf16>
    %11 = vector.shape_cast %10 : vector<1x128x128xbf16> to vector<128x128xbf16>
    %cst_10 = arith.constant dense<0.000000e+00> : vector<128x128xf32>
    %12 = tpu.matmul %11, %9, %cst_10 {dimension_numbers = #tpu.dot_dimension_numbers<[1], [0], [0], [1], [0, 0, 1, 1], [], []>} : vector<128x128xbf16>, vector<128x128xbf16>, vector<128x128xf32> -> vector<128x128xf32>
    %c1 = arith.constant 1 : index
    %c0_11 = arith.constant 0 : index
    %c0_12 = arith.constant 0 : index
    %13 = vector.load %arg4[%c1, %c0_11, %c0_12] : memref<5x128x1xf32, #tpu.memory_space<vmem>>, vector<1x128x1xf32>
    %14 = vector.shape_cast %13 : vector<1x128x1xf32> to vector<128x1xf32>
    %15 = vector.broadcast %14 : vector<128x1xf32> to vector<128x128xf32>
    %16 = arith.addf %12, %15 : vector<128x128xf32>
    %cst_13 = arith.constant 0.000000e+00 : f32
    %17 = vector.broadcast %cst_13 : f32 to vector<128x128xf32>
    %18 = arith.maximumf %16, %17 : vector<128x128xf32>
    %19 = arith.truncf %18 : vector<128x128xf32> to vector<128x128xbf16>
    %c1_14 = arith.constant 1 : index
    %c0_15 = arith.constant 0 : index
    %c0_16 = arith.constant 0 : index
    %20 = vector.load %arg3[%c1_14, %c0_15, %c0_16] : memref<4x128x128xbf16, #tpu.memory_space<vmem>>, vector<1x128x128xbf16>
    %21 = vector.shape_cast %20 : vector<1x128x128xbf16> to vector<128x128xbf16>
    %cst_17 = arith.constant dense<0.000000e+00> : vector<128x128xf32>
    %22 = tpu.matmul %21, %19, %cst_17 {dimension_numbers = #tpu.dot_dimension_numbers<[1], [0], [0], [1], [0, 0, 1, 1], [], []>} : vector<128x128xbf16>, vector<128x128xbf16>, vector<128x128xf32> -> vector<128x128xf32>
    %c2 = arith.constant 2 : index
    %c0_18 = arith.constant 0 : index
    %c0_19 = arith.constant 0 : index
    %23 = vector.load %arg4[%c2, %c0_18, %c0_19] : memref<5x128x1xf32, #tpu.memory_space<vmem>>, vector<1x128x1xf32>
    %24 = vector.shape_cast %23 : vector<1x128x1xf32> to vector<128x1xf32>
    %25 = vector.broadcast %24 : vector<128x1xf32> to vector<128x128xf32>
    %26 = arith.addf %22, %25 : vector<128x128xf32>
    %cst_20 = arith.constant 0.000000e+00 : f32
    %27 = vector.broadcast %cst_20 : f32 to vector<128x128xf32>
    %28 = arith.maximumf %26, %27 : vector<128x128xf32>
    %29 = arith.truncf %28 : vector<128x128xf32> to vector<128x128xbf16>
    %c2_21 = arith.constant 2 : index
    %c0_22 = arith.constant 0 : index
    %c0_23 = arith.constant 0 : index
    %30 = vector.load %arg3[%c2_21, %c0_22, %c0_23] : memref<4x128x128xbf16, #tpu.memory_space<vmem>>, vector<1x128x128xbf16>
    %31 = vector.shape_cast %30 : vector<1x128x128xbf16> to vector<128x128xbf16>
    %cst_24 = arith.constant dense<0.000000e+00> : vector<128x128xf32>
    %32 = tpu.matmul %31, %29, %cst_24 {dimension_numbers = #tpu.dot_dimension_numbers<[1], [0], [0], [1], [0, 0, 1, 1], [], []>} : vector<128x128xbf16>, vector<128x128xbf16>, vector<128x128xf32> -> vector<128x128xf32>
    %c3 = arith.constant 3 : index
    %c0_25 = arith.constant 0 : index
    %c0_26 = arith.constant 0 : index
    %33 = vector.load %arg4[%c3, %c0_25, %c0_26] : memref<5x128x1xf32, #tpu.memory_space<vmem>>, vector<1x128x1xf32>
    %34 = vector.shape_cast %33 : vector<1x128x1xf32> to vector<128x1xf32>
    %35 = vector.broadcast %34 : vector<128x1xf32> to vector<128x128xf32>
    %36 = arith.addf %32, %35 : vector<128x128xf32>
    %cst_27 = arith.constant 0.000000e+00 : f32
    %37 = vector.broadcast %cst_27 : f32 to vector<128x128xf32>
    %38 = arith.maximumf %36, %37 : vector<128x128xf32>
    %39 = arith.truncf %38 : vector<128x128xf32> to vector<128x128xbf16>
    %c3_28 = arith.constant 3 : index
    %c0_29 = arith.constant 0 : index
    %c0_30 = arith.constant 0 : index
    %40 = vector.load %arg3[%c3_28, %c0_29, %c0_30] : memref<4x128x128xbf16, #tpu.memory_space<vmem>>, vector<1x128x128xbf16>
    %41 = vector.shape_cast %40 : vector<1x128x128xbf16> to vector<128x128xbf16>
    %42 = vector.extract_strided_slice %41 {offsets = [0, 0], sizes = [8, 128], strides = [1, 1]} : vector<128x128xbf16> to vector<8x128xbf16>
    %cst_31 = arith.constant dense<0.000000e+00> : vector<8x128xf32>
    %43 = tpu.matmul %42, %39, %cst_31 {dimension_numbers = #tpu.dot_dimension_numbers<[1], [0], [0], [1], [0, 0, 1, 1], [], []>} : vector<8x128xbf16>, vector<128x128xbf16>, vector<8x128xf32> -> vector<8x128xf32>
    %44 = vector.extract_strided_slice %43 {offsets = [0, 0], sizes = [1, 128], strides = [1, 1]} : vector<8x128xf32> to vector<1x128xf32>
    %c4 = arith.constant 4 : index
    %c0_32 = arith.constant 0 : index
    %c0_33 = arith.constant 0 : index
    %45 = vector.load %arg4[%c4, %c0_32, %c0_33] : memref<5x128x1xf32, #tpu.memory_space<vmem>>, vector<1x128x1xf32>
    %46 = vector.shape_cast %45 : vector<1x128x1xf32> to vector<128x1xf32>
    %47 = vector.extract_strided_slice %46 {offsets = [0, 0], sizes = [1, 1], strides = [1, 1]} : vector<128x1xf32> to vector<1x1xf32>
    %48 = vector.broadcast %47 : vector<1x1xf32> to vector<1x128xf32>
    %49 = arith.addf %44, %48 : vector<1x128xf32>
    %cst_34 = arith.constant 5.000000e-01 : f32
    %50 = vector.broadcast %cst_34 : f32 to vector<1x128xf32>
    %51 = arith.mulf %50, %49 : vector<1x128xf32>
    %52 = math.tanh %51 : vector<1x128xf32>
    %cst_35 = arith.constant 5.000000e-01 : f32
    %53 = vector.broadcast %cst_35 : f32 to vector<1x128xf32>
    %54 = arith.mulf %53, %52 : vector<1x128xf32>
    %cst_36 = arith.constant 5.000000e-01 : f32
    %55 = vector.broadcast %cst_36 : f32 to vector<1x128xf32>
    %56 = arith.addf %54, %55 : vector<1x128xf32>
    %c0_37 = arith.constant 0 : index
    %c0_38 = arith.constant 0 : index
    %57 = vector.load %arg5[%c0_37, %c0_38] : memref<1x128xf32, #tpu.memory_space<vmem>>, vector<1x128xf32>
    tpu.vector_store %arg5[%c0_37, %c0_38], %56 {strides = array<i32>} : memref<1x128xf32, #tpu.memory_space<vmem>>, vector<1x128xf32>,
    return
  }
  func.func @transform_0(%arg0: i32) -> (i32, i32) {
    %c0_i32 = arith.constant 0 : i32
    %c0_i32_0 = arith.constant 0 : i32
    return %c0_i32, %arg0 : i32, i32
  }
  func.func @transform_1(%arg0: i32) -> (i32, i32) {
    %c0_i32 = arith.constant 0 : i32
    %c0_i32_0 = arith.constant 0 : i32
    %c0_i32_1 = arith.constant 0 : i32
    return %c0_i32, %c0_i32_0 : i32, i32
  }
  func.func @transform_2(%arg0: i32) -> (i32, i32, i32) {
    %c0_i32 = arith.constant 0 : i32
    %c0_i32_0 = arith.constant 0 : i32
    %c0_i32_1 = arith.constant 0 : i32
    %c0_i32_2 = arith.constant 0 : i32
    return %c0_i32, %c0_i32_0, %c0_i32_1 : i32, i32, i32
  }
  func.func @transform_3(%arg0: i32) -> (i32, i32, i32) {
    %c0_i32 = arith.constant 0 : i32
    %c0_i32_0 = arith.constant 0 : i32
    %c0_i32_1 = arith.constant 0 : i32
    %c0_i32_2 = arith.constant 0 : i32
    return %c0_i32, %c0_i32_0, %c0_i32_1 : i32, i32, i32
  }
  func.func @transform_4(%arg0: i32) -> (i32, i32) {
    %c0_i32 = arith.constant 0 : i32
    %c0_i32_0 = arith.constant 0 : i32
    return %c0_i32, %arg0 : i32, i32
  }
}

</mosaic_0001>

<llo_original>
// kernel: tpu_custom_call.1
$region0: #{tpu_custom_call.1}
  #allocation0 [shape = 'u32[]', space=smem, size = 0x4, offset = 0x4, fixed_abs, tag = 'smem constant byte address 0x4 - core index']
  #allocation1 [shape = 'u32[144,128]{1,0:T(1,128)}', space=vmem, size = 0x12000, scoped, tag = 'internal scratch']
  %s0 = inlined_call_operand.vmem [shape: bf16[32,128], index: 0, kind: input, shape index: {}]
  %s1 = inlined_call_operand.vmem [shape: bf16[128,32], index: 1, kind: input, shape index: {}]
  %s2 = inlined_call_operand.vmem [shape: bf16[4,128,128], index: 2, kind: input, shape index: {}]
  %s3 = inlined_call_operand.vmem [shape: f32[5,128,1], index: 3, kind: input, shape index: {}]
  %s4 = inlined_call_operand.hbm [shape: f32[1,128], index: 4, kind: output, shape index: {}]
  %s5 = sld [smem:[#allocation0]]
  $region26: #{tpu_custom_call.1} parent=0
    _
  %s7 = ssub.s32 1, %s5
  %s8 = scalar_select 0, %s7, %s5
  $region1: #{tpu_custom_call.1} parent=0
    #allocation2 [shape = 'u8[512]{0}', space=vmem, size = 0x400, scoped, tag = 'output window, operand 0, single buffered']
    #allocation3 [shape = 's32[1]{0}', space=sflag, size = 0x4, scoped, tag = 'scoped memory for tpu_custom_call.1']
    %9 = vsyncpa [#allocation3], 0
    // Predicated region
    $region2: #{tpu_custom_call.1} parent=1 // pred_check
      _
    $region3: #{tpu_custom_call.1} parent=1 // pred_check_branch
      %11 = sbr.rel (0) target = $region5
    $region4: #{tpu_custom_call.1} parent=1 // pred_region
      _
    $region5: #{tpu_custom_call.1} parent=1 // pred_fallthru
      _
    // Predicated region
    $region6: #{tpu_custom_call.1} parent=1 // pred_check
      _
    $region7: #{tpu_custom_call.1} parent=1 // pred_check_branch
      %13 = sbr.rel (0) target = $region9
    $region8: #{tpu_custom_call.1} parent=1 // pred_region
      _
    $region9: #{tpu_custom_call.1} parent=1 // pred_fallthru
      _
    // Predicated region
    $region10: #{tpu_custom_call.1} parent=1 // pred_check
      _
    $region11: #{tpu_custom_call.1} parent=1 // pred_check_branch
      %15 = sbr.rel (0) target = $region13
    $region12: #{tpu_custom_call.1} parent=1 // pred_region
      _
    $region13: #{tpu_custom_call.1} parent=1 // pred_fallthru
      _
    // Predicated region
    $region14: #{tpu_custom_call.1} parent=1 // pred_check
      _
    $region15: #{tpu_custom_call.1} parent=1 // pred_check_branch
      %17 = sbr.rel (0) target = $region17
    $region16: #{tpu_custom_call.1} parent=1 // pred_region
      _
    $region17: #{tpu_custom_call.1} parent=1 // pred_fallthru
      _
    %v19 = vld [vmem:[%s1] sm:$0xf]
    %v20 = vld [vmem:[%s1 + $0x4] sm:$0xf]
    %v21 = vld [vmem:[%s1 + $0x8] sm:$0xf]
    %v22 = vld [vmem:[%s1 + $0xc] sm:$0xf]
    %v23 = vld [vmem:[%s1 + $0x10] sm:$0xf]
    %v24 = vld [vmem:[%s1 + $0x14] sm:$0xf]
    %v25 = vld [vmem:[%s1 + $0x18] sm:$0xf]
    %v26 = vld [vmem:[%s1 + $0x1c] sm:$0xf]
    %v27 = vld [vmem:[%s1 + $0x20] sm:$0xf]
    %v28 = vld [vmem:[%s1 + $0x24] sm:$0xf]
    %v29 = vld [vmem:[%s1 + $0x28] sm:$0xf]
    %v30 = vld [vmem:[%s1 + $0x2c] sm:$0xf]
    %v31 = vld [vmem:[%s1 + $0x30] sm:$0xf]
    %v32 = vld [vmem:[%s1 + $0x34] sm:$0xf]
    %v33 = vld [vmem:[%s1 + $0x38] sm:$0xf]
    %v34 = vld [vmem:[%s1 + $0x3c] sm:$0xf]
    %v35 = vld [vmem:[%s0] sm:$0xf]
    %v36 = vld [vmem:[%s0 + $0x4] sm:$0xf]
    %v37 = vld [vmem:[%s0 + $0x8] sm:$0xf]
    %v38 = vld [vmem:[%s0 + $0xc] sm:$0xf]
    %v39 = vld [vmem:[%s3] sm:$0xff]
    %v40 = vld [vmem:[%s3 + $0x8] sm:$0xff]
    %v41 = vld [vmem:[%s3 + $0x10] sm:$0xff]
    %v42 = vld [vmem:[%s3 + $0x18] sm:$0xff]
    %v43 = vld [vmem:[%s3 + $0x20] sm:$0xff]
    %v44 = vld [vmem:[%s3 + $0x28] sm:$0xff]
    %v45 = vld [vmem:[%s3 + $0x30] sm:$0xff]
    %v46 = vld [vmem:[%s3 + $0x38] sm:$0xff]
    %v47 = vld [vmem:[%s3 + $0x40] sm:$0xff]
    %v48 = vld [vmem:[%s3 + $0x48] sm:$0xff]
    %v49 = vld [vmem:[%s3 + $0x50] sm:$0xff]
    %v50 = vld [vmem:[%s3 + $0x58] sm:$0xff]
    %v51 = vld [vmem:[%s3 + $0x60] sm:$0xff]
    %v52 = vld [vmem:[%s3 + $0x68] sm:$0xff]
    %v53 = vld [vmem:[%s3 + $0x70] sm:$0xff]
    %v54 = vld [vmem:[%s3 + $0x78] sm:$0xff]
    %56 = vset.pattern.permute.xlu0 0
    %57 = vperm.xlu0 %56, %v39
    %v58 = vpop.permute.xlu0 %57
    %61 = vset.pattern.permute.xlu0 0
    %62 = vperm.xlu0 %61, %v40
    %v63 = vpop.permute.xlu0 %62
    %66 = vset.pattern.permute.xlu0 0
    %67 = vperm.xlu0 %66, %v41
    %v68 = vpop.permute.xlu0 %67
    %71 = vset.pattern.permute.xlu0 0
    %72 = vperm.xlu0 %71, %v42
    %v73 = vpop.permute.xlu0 %72
    %76 = vset.pattern.permute.xlu0 0
    %77 = vperm.xlu0 %76, %v43
    %v78 = vpop.permute.xlu0 %77
    %81 = vset.pattern.permute.xlu0 0
    %82 = vperm.xlu0 %81, %v44
    %v83 = vpop.permute.xlu0 %82
    %86 = vset.pattern.permute.xlu0 0
    %87 = vperm.xlu0 %86, %v45
    %v88 = vpop.permute.xlu0 %87
    %91 = vset.pattern.permute.xlu0 0
    %92 = vperm.xlu0 %91, %v46
    %v93 = vpop.permute.xlu0 %92
    %96 = vset.pattern.permute.xlu0 0
    %97 = vperm.xlu0 %96, %v47
    %v98 = vpop.permute.xlu0 %97
    %101 = vset.pattern.permute.xlu0 0
    %102 = vperm.xlu0 %101, %v48
    %v103 = vpop.permute.xlu0 %102
    %106 = vset.pattern.permute.xlu0 0
    %107 = vperm.xlu0 %106, %v49
    %v108 = vpop.permute.xlu0 %107
    %111 = vset.pattern.permute.xlu0 0
    %112 = vperm.xlu0 %111, %v50
    %v113 = vpop.permute.xlu0 %112
    %116 = vset.pattern.permute.xlu0 0
    %117 = vperm.xlu0 %116, %v51
    %v118 = vpop.permute.xlu0 %117
    %121 = vset.pattern.permute.xlu0 0
    %122 = vperm.xlu0 %121, %v52
    %v123 = vpop.permute.xlu0 %122
    %126 = vset.pattern.permute.xlu0 0
    %127 = vperm.xlu0 %126, %v53
    %v128 = vpop.permute.xlu0 %127
    %131 = vset.pattern.permute.xlu0 0
    %132 = vperm.xlu0 %131, %v54
    %v133 = vpop.permute.xlu0 %132
    %v151 = vunpack.c.l.b16 %v19
    %v152 = vunpack.c.l.b16 %v20
    %v153 = vunpack.c.l.b16 %v21
    %v154 = vunpack.c.l.b16 %v22
    %v155 = vunpack.c.l.b16 %v23
    %v156 = vunpack.c.l.b16 %v24
    %v157 = vunpack.c.l.b16 %v25
    %v158 = vunpack.c.l.b16 %v26
    %v159 = vunpack.c.l.b16 %v27
    %v160 = vunpack.c.l.b16 %v28
    %v161 = vunpack.c.l.b16 %v29
    %v162 = vunpack.c.l.b16 %v30
    %v163 = vunpack.c.l.b16 %v31
    %v164 = vunpack.c.l.b16 %v32
    %v165 = vunpack.c.l.b16 %v33
    %v166 = vunpack.c.l.b16 %v34
    %v167 = vpack.c.b16 %v152, %v151
    %v168 = vpack.c.b16 %v154, %v153
    %v169 = vpack.c.b16 %v156, %v155
    %v170 = vpack.c.b16 %v158, %v157
    %v171 = vpack.c.b16 %v160, %v159
    %v172 = vpack.c.b16 %v162, %v161
    %v173 = vpack.c.b16 %v164, %v163
    %v174 = vpack.c.b16 %v166, %v165
    %v179 = vunpack.c.l.b16 %v35
    %v180 = vunpack.c.l.b16 %v36
    %v181 = vunpack.c.l.b16 %v37
    %v182 = vunpack.c.l.b16 %v38
    %v183 = vpack.c.b16 %v180, %v179
    %v184 = vpack.c.b16 %v182, %v181
    %vm187 = vcmask 261120
    %v189 = vsel %vm187, %v167, 0
    %v192 = vsel %vm187, %v168, 0
    %v195 = vsel %vm187, %v169, 0
    %v198 = vsel %vm187, %v170, 0
    %v201 = vsel %vm187, %v171, 0
    %v204 = vsel %vm187, %v172, 0
    %v207 = vsel %vm187, %v173, 0
    %v210 = vsel %vm187, %v174, 0
    %212 = vmatprep.subr.bf16.mxu0 0
    %213 = vmatpush1.bf16.msra.mxu0 %v183
    %214 = vmatprep.subr.bf16.mxu0 0
    %215 = vmatpush1.bf16.msra.mxu0 %v184
    %216 = vmatprep.subr.bf16.mxu0 0
    %217 = vmatpush1.bf16.msra.mxu0 0
    %218 = vmatprep.subr.bf16.mxu0 0
    %219 = vmatpush1.bf16.msra.mxu0 0
    %220 = vmatprep.subr.bf16.mxu0 0
    %221 = vmatpush1.bf16.msra.mxu0 0
    %222 = vmatprep.subr.bf16.mxu0 0
    %223 = vmatpush1.bf16.msra.mxu0 0
    %224 = vmatprep.subr.bf16.mxu0 0
    %225 = vmatpush1.bf16.msra.mxu0 0
    %226 = vmatprep.subr.bf16.mxu0 0
    %227 = vmatpush1.bf16.msra.mxu0 0
    %228 = vmatprep.subr.bf16.mxu0 0
    %229 = vmatpush1.bf16.msra.mxu0 0
    %230 = vmatprep.subr.bf16.mxu0 0
    %231 = vmatpush1.bf16.msra.mxu0 0
    %232 = vmatprep.subr.bf16.mxu0 0
    %233 = vmatpush1.bf16.msra.mxu0 0
    %234 = vmatprep.subr.bf16.mxu0 0
    %235 = vmatpush1.bf16.msra.mxu0 0
    %236 = vmatprep.subr.bf16.mxu0 0
    %237 = vmatpush1.bf16.msra.mxu0 0
    %238 = vmatprep.subr.bf16.mxu0 0
    %239 = vmatpush1.bf16.msra.mxu0 0
    %240 = vmatprep.subr.bf16.mxu0 0
    %241 = vmatpush1.bf16.msra.mxu0 0
    %242 = vmatprep.subr.bf16.mxu0 0
    %243 = vmatpush1.bf16.msra.mxu0 0
    %244 = vmatprep.mubr.bf16.mxu0 0
    %245 = vmatmul.mubr.bf16.gmra.mrb[0].mxu0 %v189
    %v246 = vpop.f32.mrb[0].mxu0
    %v247 = vadd.f32 %v58, %v246
    %v248 = vpop.f32.mrb[0].mxu0
    %v249 = vpop.f32.mrb[0].mxu0
    %v250 = vadd.f32 %v63, %v249
    %v251 = vpop.f32.mrb[0].mxu0
    %252 = vmatprep.mubr.bf16.mxu0 0
    %253 = vmatmul.mubr.bf16.gmra.mrb[0].mxu0 %v192
    %v254 = vpop.f32.mrb[0].mxu0
    %v255 = vadd.f32 %v68, %v254
    %v256 = vpop.f32.mrb[0].mxu0
    %v257 = vpop.f32.mrb[0].mxu0
    %v258 = vadd.f32 %v73, %v257
    %v259 = vpop.f32.mrb[0].mxu0
    %260 = vmatprep.mubr.bf16.mxu0 0
    %261 = vmatmul.mubr.bf16.gmra.mrb[0].mxu0 %v195
    %v262 = vpop.f32.mrb[0].mxu0
    %v263 = vadd.f32 %v78, %v262
    %v264 = vpop.f32.mrb[0].mxu0
    %v265 = vpop.f32.mrb[0].mxu0
    %v266 = vadd.f32 %v83, %v265
    %v267 = vpop.f32.mrb[0].mxu0
    %268 = vmatprep.mubr.bf16.mxu0 0
    %269 = vmatmul.mubr.bf16.gmra.mrb[0].mxu0 %v198
    %v270 = vpop.f32.mrb[0].mxu0
    %v271 = vadd.f32 %v88, %v270
    %v272 = vpop.f32.mrb[0].mxu0
    %v273 = vpop.f32.mrb[0].mxu0
    %v274 = vadd.f32 %v93, %v273
    %v275 = vpop.f32.mrb[0].mxu0
    %276 = vmatprep.mubr.bf16.mxu0 0
    %277 = vmatmul.mubr.bf16.gmra.mrb[0].mxu0 %v201
    %v278 = vpop.f32.mrb[0].mxu0
    %v279 = vadd.f32 %v98, %v278
    %v280 = vpop.f32.mrb[0].mxu0
    %v281 = vpop.f32.mrb[0].mxu0
    %v282 = vadd.f32 %v103, %v281
    %v283 = vpop.f32.mrb[0].mxu0
    %284 = vmatprep.mubr.bf16.mxu0 0
    %285 = vmatmul.mubr.bf16.gmra.mrb[0].mxu0 %v204
    %v286 = vpop.f32.mrb[0].mxu0
    %v287 = vadd.f32 %v108, %v286
    %v288 = vpop.f32.mrb[0].mxu0
    %v289 = vpop.f32.mrb[0].mxu0
    %v290 = vadd.f32 %v113, %v289
    %v291 = vpop.f32.mrb[0].mxu0
    %292 = vmatprep.mubr.bf16.mxu0 0
    %293 = vmatmul.mubr.bf16.gmra.mrb[0].mxu0 %v207
    %v294 = vpop.f32.mrb[0].mxu0
    %v295 = vadd.f32 %v118, %v294
    %v296 = vpop.f32.mrb[0].mxu0
    %v297 = vpop.f32.mrb[0].mxu0
    %v298 = vadd.f32 %v123, %v297
    %v299 = vpop.f32.mrb[0].mxu0
    %300 = vmatprep.mubr.bf16.mxu0 0
    %301 = vmatmul.mubr.bf16.gmra.mrb[0].mxu0 %v210
    %v302 = vpop.f32.mrb[0].mxu0
    %v303 = vadd.f32 %v128, %v302
    %v304 = vpop.f32.mrb[0].mxu0
    %v305 = vpop.f32.mrb[0].mxu0
    %v306 = vadd.f32 %v133, %v305
    %v307 = vpop.f32.mrb[0].mxu0
    %308 = vdwg.mxu0
    %v309 = vmax.f32 %v247, 0.0
    %v310 = vmax.f32 %v250, 0.0
    %v311 = vmax.f32 %v255, 0.0
    %v312 = vmax.f32 %v258, 0.0
    %v313 = vmax.f32 %v263, 0.0
    %v314 = vmax.f32 %v266, 0.0
    %v315 = vmax.f32 %v271, 0.0
    %v316 = vmax.f32 %v274, 0.0
    %v317 = vmax.f32 %v279, 0.0
    %v318 = vmax.f32 %v282, 0.0
    %v319 = vmax.f32 %v287, 0.0
    %v320 = vmax.f32 %v290, 0.0
    %v321 = vmax.f32 %v295, 0.0
    %v322 = vmax.f32 %v298, 0.0
    %v323 = vmax.f32 %v303, 0.0
    %v324 = vmax.f32 %v306, 0.0
    %v325 = vpack.c.bf16 %v310, %v309
    %v326 = vpack.c.bf16 %v312, %v311
    %v327 = vpack.c.bf16 %v314, %v313
    %v328 = vpack.c.bf16 %v316, %v315
    %v329 = vpack.c.bf16 %v318, %v317
    %v330 = vpack.c.bf16 %v320, %v319
    %v331 = vpack.c.bf16 %v322, %v321
    %v332 = vpack.c.bf16 %v324, %v323
    %v333 = vld [vmem:[%s2] sm:$0xf]
    %v334 = vld [vmem:[%s2 + $0x4] sm:$0xf]
    %v335 = vld [vmem:[%s2 + $0x8] sm:$0xf]
    %v336 = vld [vmem:[%s2 + $0xc] sm:$0xf]
    %v337 = vld [vmem:[%s2 + $0x10] sm:$0xf]
    %v338 = vld [vmem:[%s2 + $0x14] sm:$0xf]
    %v339 = vld [vmem:[%s2 + $0x18] sm:$0xf]
    %v340 = vld [vmem:[%s2 + $0x1c] sm:$0xf]
    %v341 = vld [vmem:[%s2 + $0x20] sm:$0xf]
    %v342 = vld [vmem:[%s2 + $0x24] sm:$0xf]
    %v343 = vld [vmem:[%s2 + $0x28] sm:$0xf]
    %v344 = vld [vmem:[%s2 + $0x2c] sm:$0xf]
    %v345 = vld [vmem:[%s2 + $0x30] sm:$0xf]
    %v346 = vld [vmem:[%s2 + $0x34] sm:$0xf]
    %v347 = vld [vmem:[%s2 + $0x38] sm:$0xf]
    %v348 = vld [vmem:[%s2 + $0x3c] sm:$0xf]
    %s349 = scalar_lea.vmem %s3, 128
    %v350 = vld [vmem:[%s349] sm:$0xff]
    %v351 = vld [vmem:[%s349 + $0x8] sm:$0xff]
    %v352 = vld [vmem:[%s349 + $0x10] sm:$0xff]
    %v353 = vld [vmem:[%s349 + $0x18] sm:$0xff]
    %v354 = vld [vmem:[%s349 + $0x20] sm:$0xff]
    %v355 = vld [vmem:[%s349 + $0x28] sm:$0xff]
    %v356 = vld [vmem:[%s349 + $0x30] sm:$0xff]
    %v357 = vld [vmem:[%s349 + $0x38] sm:$0xff]
    %v358 = vld [vmem:[%s349 + $0x40] sm:$0xff]
    %v359 = vld [vmem:[%s349 + $0x48] sm:$0xff]
    %v360 = vld [vmem:[%s349 + $0x50] sm:$0xff]
    %v361 = vld [vmem:[%s349 + $0x58] sm:$0xff]
    %v362 = vld [vmem:[%s349 + $0x60] sm:$0xff]
    %v363 = vld [vmem:[%s349 + $0x68] sm:$0xff]
    %v364 = vld [vmem:[%s349 + $0x70] sm:$0xff]
    %v365 = vld [vmem:[%s349 + $0x78] sm:$0xff]
    %367 = vset.pattern.permute.xlu0 0
    %368 = vperm.xlu0 %367, %v350
    %v369 = vpop.permute.xlu0 %368
    %372 = vset.pattern.permute.xlu0 0
    %373 = vperm.xlu0 %372, %v351
    %v374 = vpop.permute.xlu0 %373
    %377 = vset.pattern.permute.xlu0 0
    %378 = vperm.xlu0 %377, %v352
    %v379 = vpop.permute.xlu0 %378
    %382 = vset.pattern.permute.xlu0 0
    %383 = vperm.xlu0 %382, %v353
    %v384 = vpop.permute.xlu0 %383
    %387 = vset.pattern.permute.xlu0 0
    %388 = vperm.xlu0 %387, %v354
    %v389 = vpop.permute.xlu0 %388
    %392 = vset.pattern.permute.xlu0 0
    %393 = vperm.xlu0 %392, %v355
    %v394 = vpop.permute.xlu0 %393
    %397 = vset.pattern.permute.xlu0 0
    %398 = vperm.xlu0 %397, %v356
    %v399 = vpop.permute.xlu0 %398
    %402 = vset.pattern.permute.xlu0 0
    %403 = vperm.xlu0 %402, %v357
    %v404 = vpop.permute.xlu0 %403
    %407 = vset.pattern.permute.xlu0 0
    %408 = vperm.xlu0 %407, %v358
    %v409 = vpop.permute.xlu0 %408
    %412 = vset.pattern.permute.xlu0 0
    %413 = vperm.xlu0 %412, %v359
    %v414 = vpop.permute.xlu0 %413
    %417 = vset.pattern.permute.xlu0 0
    %418 = vperm.xlu0 %417, %v360
    %v419 = vpop.permute.xlu0 %418
    %422 = vset.pattern.permute.xlu0 0
    %423 = vperm.xlu0 %422, %v361
    %v424 = vpop.permute.xlu0 %423
    %427 = vset.pattern.permute.xlu0 0
    %428 = vperm.xlu0 %427, %v362
    %v429 = vpop.permute.xlu0 %428
    %432 = vset.pattern.permute.xlu0 0
    %433 = vperm.xlu0 %432, %v363
    %v434 = vpop.permute.xlu0 %433
    %437 = vset.pattern.permute.xlu0 0
    %438 = vperm.xlu0 %437, %v364
    %v439 = vpop.permute.xlu0 %438
    %442 = vset.pattern.permute.xlu0 0
    %443 = vperm.xlu0 %442, %v365
    %v444 = vpop.permute.xlu0 %443
    %v462 = vunpack.c.l.b16 %v333
    %v463 = vunpack.c.l.b16 %v334
    %v464 = vunpack.c.l.b16 %v335
    %v465 = vunpack.c.l.b16 %v336
    %v466 = vunpack.c.l.b16 %v337
    %v467 = vunpack.c.l.b16 %v338
    %v468 = vunpack.c.l.b16 %v339
    %v469 = vunpack.c.l.b16 %v340
    %v470 = vunpack.c.l.b16 %v341
    %v471 = vunpack.c.l.b16 %v342
    %v472 = vunpack.c.l.b16 %v343
    %v473 = vunpack.c.l.b16 %v344
    %v474 = vunpack.c.l.b16 %v345
    %v475 = vunpack.c.l.b16 %v346
    %v476 = vunpack.c.l.b16 %v347
    %v477 = vunpack.c.l.b16 %v348
    %v478 = vpack.c.b16 %v463, %v462
    %v479 = vpack.c.b16 %v465, %v464
    %v480 = vpack.c.b16 %v467, %v466
    %v481 = vpack.c.b16 %v469, %v468
    %v482 = vpack.c.b16 %v471, %v470
    %v483 = vpack.c.b16 %v473, %v472
    %v484 = vpack.c.b16 %v475, %v474
    %v485 = vpack.c.b16 %v477, %v476
    %494 = vmatprep.subr.bf16.mxu0 0
    %495 = vmatpush1.bf16.msra.mxu0 %v325
    %496 = vmatprep.subr.bf16.mxu0 0
    %497 = vmatpush1.bf16.msra.mxu0 %v326
    %498 = vmatprep.subr.bf16.mxu0 0
    %499 = vmatpush1.bf16.msra.mxu0 %v327
    %500 = vmatprep.subr.bf16.mxu0 0
    %501 = vmatpush1.bf16.msra.mxu0 %v328
    %502 = vmatprep.subr.bf16.mxu0 0
    %503 = vmatpush1.bf16.msra.mxu0 %v329
    %504 = vmatprep.subr.bf16.mxu0 0
    %505 = vmatpush1.bf16.msra.mxu0 %v330
    %506 = vmatprep.subr.bf16.mxu0 0
    %507 = vmatpush1.bf16.msra.mxu0 %v331
    %508 = vmatprep.subr.bf16.mxu0 0
    %509 = vmatpush1.bf16.msra.mxu0 %v332
    %510 = vmatprep.subr.bf16.mxu0 0
    %511 = vmatpush1.bf16.msra.mxu0 0
    %512 = vmatprep.subr.bf16.mxu0 0
    %513 = vmatpush1.bf16.msra.mxu0 0
    %514 = vmatprep.subr.bf16.mxu0 0
    %515 = vmatpush1.bf16.msra.mxu0 0
    %516 = vmatprep.subr.bf16.mxu0 0
    %517 = vmatpush1.bf16.msra.mxu0 0
    %518 = vmatprep.subr.bf16.mxu0 0
    %519 = vmatpush1.bf16.msra.mxu0 0
    %520 = vmatprep.subr.bf16.mxu0 0
    %521 = vmatpush1.bf16.msra.mxu0 0
    %522 = vmatprep.subr.bf16.mxu0 0
    %523 = vmatpush1.bf16.msra.mxu0 0
    %524 = vmatprep.subr.bf16.mxu0 0
    %525 = vmatpush1.bf16.msra.mxu0 0
    %526 = vmatprep.mubr.bf16.mxu0 0
    %527 = vmatmul.mubr.bf16.gmra.mrb[0].mxu0 %v478
    %v528 = vpop.f32.mrb[0].mxu0
    %v529 = vadd.f32 %v369, %v528
    %v530 = vpop.f32.mrb[0].mxu0
    %v531 = vpop.f32.mrb[0].mxu0
    %v532 = vadd.f32 %v374, %v531
    %v533 = vpop.f32.mrb[0].mxu0
    %534 = vmatprep.mubr.bf16.mxu0 0
    %535 = vmatmul.mubr.bf16.gmra.mrb[0].mxu0 %v479
    %v536 = vpop.f32.mrb[0].mxu0
    %v537 = vadd.f32 %v379, %v536
    %v538 = vpop.f32.mrb[0].mxu0
    %v539 = vpop.f32.mrb[0].mxu0
    %v540 = vadd.f32 %v384, %v539
    %v541 = vpop.f32.mrb[0].mxu0
    %542 = vmatprep.mubr.bf16.mxu0 0
    %543 = vmatmul.mubr.bf16.gmra.mrb[0].mxu0 %v480
    %v544 = vpop.f32.mrb[0].mxu0
    %v545 = vadd.f32 %v389, %v544
    %v546 = vpop.f32.mrb[0].mxu0
    %v547 = vpop.f32.mrb[0].mxu0
    %v548 = vadd.f32 %v394, %v547
    %v549 = vpop.f32.mrb[0].mxu0
    %550 = vmatprep.mubr.bf16.mxu0 0
    %551 = vmatmul.mubr.bf16.gmra.mrb[0].mxu0 %v481
    %v552 = vpop.f32.mrb[0].mxu0
    %v553 = vadd.f32 %v399, %v552
    %v554 = vpop.f32.mrb[0].mxu0
    %v555 = vpop.f32.mrb[0].mxu0
    %v556 = vadd.f32 %v404, %v555
    %v557 = vpop.f32.mrb[0].mxu0
    %558 = vmatprep.mubr.bf16.mxu0 0
    %559 = vmatmul.mubr.bf16.gmra.mrb[0].mxu0 %v482
    %v560 = vpop.f32.mrb[0].mxu0
    %v561 = vadd.f32 %v409, %v560
    %v562 = vpop.f32.mrb[0].mxu0
    %v563 = vpop.f32.mrb[0].mxu0
    %v564 = vadd.f32 %v414, %v563
    %v565 = vpop.f32.mrb[0].mxu0
    %566 = vmatprep.mubr.bf16.mxu0 0
    %567 = vmatmul.mubr.bf16.gmra.mrb[0].mxu0 %v483
    %v568 = vpop.f32.mrb[0].mxu0
    %v569 = vadd.f32 %v419, %v568
    %v570 = vpop.f32.mrb[0].mxu0
    %v571 = vpop.f32.mrb[0].mxu0
    %v572 = vadd.f32 %v424, %v571
    %v573 = vpop.f32.mrb[0].mxu0
    %574 = vmatprep.mubr.bf16.mxu0 0
    %575 = vmatmul.mubr.bf16.gmra.mrb[0].mxu0 %v484
    %v576 = vpop.f32.mrb[0].mxu0
    %v577 = vadd.f32 %v429, %v576
    %v578 = vpop.f32.mrb[0].mxu0
    %v579 = vpop.f32.mrb[0].mxu0
    %v580 = vadd.f32 %v434, %v579
    %v581 = vpop.f32.mrb[0].mxu0
    %582 = vmatprep.mubr.bf16.mxu0 0
    %583 = vmatmul.mubr.bf16.gmra.mrb[0].mxu0 %v485
    %v584 = vpop.f32.mrb[0].mxu0
    %v585 = vadd.f32 %v439, %v584
    %v586 = vpop.f32.mrb[0].mxu0
    %v587 = vpop.f32.mrb[0].mxu0
    %v588 = vadd.f32 %v444, %v587
    %v589 = vpop.f32.mrb[0].mxu0
    %590 = vdwg.mxu0
    %v591 = vmax.f32 %v529, 0.0
    %v592 = vmax.f32 %v532, 0.0
    %v593 = vmax.f32 %v537, 0.0
    %v594 = vmax.f32 %v540, 0.0
    %v595 = vmax.f32 %v545, 0.0
    %v596 = vmax.f32 %v548, 0.0
    %v597 = vmax.f32 %v553, 0.0
    %v598 = vmax.f32 %v556, 0.0
    %v599 = vmax.f32 %v561, 0.0
    %v600 = vmax.f32 %v564, 0.0
    %v601 = vmax.f32 %v569, 0.0
    %v602 = vmax.f32 %v572, 0.0
    %v603 = vmax.f32 %v577, 0.0
    %v604 = vmax.f32 %v580, 0.0
    %v605 = vmax.f32 %v585, 0.0
    %v606 = vmax.f32 %v588, 0.0
    %v607 = vpack.c.bf16 %v592, %v591
    %v608 = vpack.c.bf16 %v594, %v593
    %v609 = vpack.c.bf16 %v596, %v595
    %v610 = vpack.c.bf16 %v598, %v597
    %v611 = vpack.c.bf16 %v600, %v599
    %v612 = vpack.c.bf16 %v602, %v601
    %v613 = vpack.c.bf16 %v604, %v603
    %v614 = vpack.c.bf16 %v606, %v605
    %s615 = scalar_lea.vmem %s2, 64
    %v616 = vld [vmem:[%s615] sm:$0xf]
    %v617 = vld [vmem:[%s615 + $0x4] sm:$0xf]
    %v618 = vld [vmem:[%s615 + $0x8] sm:$0xf]
    %v619 = vld [vmem:[%s615 + $0xc] sm:$0xf]
    %v620 = vld [vmem:[%s615 + $0x10] sm:$0xf]
    %v621 = vld [vmem:[%s615 + $0x14] sm:$0xf]
    %v622 = vld [vmem:[%s615 + $0x18] sm:$0xf]
    %v623 = vld [vmem:[%s615 + $0x1c] sm:$0xf]
    %v624 = vld [vmem:[%s615 + $0x20] sm:$0xf]
    %v625 = vld [vmem:[%s615 + $0x24] sm:$0xf]
    %v626 = vld [vmem:[%s615 + $0x28] sm:$0xf]
    %v627 = vld [vmem:[%s615 + $0x2c] sm:$0xf]
    %v628 = vld [vmem:[%s615 + $0x30] sm:$0xf]
    %v629 = vld [vmem:[%s615 + $0x34] sm:$0xf]
    %v630 = vld [vmem:[%s615 + $0x38] sm:$0xf]
    %v631 = vld [vmem:[%s615 + $0x3c] sm:$0xf]
    %s632 = scalar_lea.vmem %s3, 256
    %v633 = vld [vmem:[%s632] sm:$0xff]
    %v634 = vld [vmem:[%s632 + $0x8] sm:$0xff]
    %v635 = vld [vmem:[%s632 + $0x10] sm:$0xff]
    %v636 = vld [vmem:[%s632 + $0x18] sm:$0xff]
    %v637 = vld [vmem:[%s632 + $0x20] sm:$0xff]
    %v638 = vld [vmem:[%s632 + $0x28] sm:$0xff]
    %v639 = vld [vmem:[%s632 + $0x30] sm:$0xff]
    %v640 = vld [vmem:[%s632 + $0x38] sm:$0xff]
    %v641 = vld [vmem:[%s632 + $0x40] sm:$0xff]
    %v642 = vld [vmem:[%s632 + $0x48] sm:$0xff]
    %v643 = vld [vmem:[%s632 + $0x50] sm:$0xff]
    %v644 = vld [vmem:[%s632 + $0x58] sm:$0xff]
    %v645 = vld [vmem:[%s632 + $0x60] sm:$0xff]
    %v646 = vld [vmem:[%s632 + $0x68] sm:$0xff]
    %v647 = vld [vmem:[%s632 + $0x70] sm:$0xff]
    %v648 = vld [vmem:[%s632 + $0x78] sm:$0xff]
    %650 = vset.pattern.permute.xlu0 0
    %651 = vperm.xlu0 %650, %v633
    %v652 = vpop.permute.xlu0 %651
    %655 = vset.pattern.permute.xlu0 0
    %656 = vperm.xlu0 %655, %v634
    %v657 = vpop.permute.xlu0 %656
    %660 = vset.pattern.permute.xlu0 0
    %661 = vperm.xlu0 %660, %v635
    %v662 = vpop.permute.xlu0 %661
    %665 = vset.pattern.permute.xlu0 0
    %666 = vperm.xlu0 %665, %v636
    %v667 = vpop.permute.xlu0 %666
    %670 = vset.pattern.permute.xlu0 0
    %671 = vperm.xlu0 %670, %v637
    %v672 = vpop.permute.xlu0 %671
    %675 = vset.pattern.permute.xlu0 0
    %676 = vperm.xlu0 %675, %v638
    %v677 = vpop.permute.xlu0 %676
    %680 = vset.pattern.permute.xlu0 0
    %681 = vperm.xlu0 %680, %v639
    %v682 = vpop.permute.xlu0 %681
    %685 = vset.pattern.permute.xlu0 0
    %686 = vperm.xlu0 %685, %v640
    %v687 = vpop.permute.xlu0 %686
    %690 = vset.pattern.permute.xlu0 0
    %691 = vperm.xlu0 %690, %v641
    %v692 = vpop.permute.xlu0 %691
    %695 = vset.pattern.permute.xlu0 0
    %696 = vperm.xlu0 %695, %v642
    %v697 = vpop.permute.xlu0 %696
    %700 = vset.pattern.permute.xlu0 0
    %701 = vperm.xlu0 %700, %v643
    %v702 = vpop.permute.xlu0 %701
    %705 = vset.pattern.permute.xlu0 0
    %706 = vperm.xlu0 %705, %v644
    %v707 = vpop.permute.xlu0 %706
    %710 = vset.pattern.permute.xlu0 0
    %711 = vperm.xlu0 %710, %v645
    %v712 = vpop.permute.xlu0 %711
    %715 = vset.pattern.permute.xlu0 0
    %716 = vperm.xlu0 %715, %v646
    %v717 = vpop.permute.xlu0 %716
    %720 = vset.pattern.permute.xlu0 0
    %721 = vperm.xlu0 %720, %v647
    %v722 = vpop.permute.xlu0 %721
    %725 = vset.pattern.permute.xlu0 0
    %726 = vperm.xlu0 %725, %v648
    %v727 = vpop.permute.xlu0 %726
    %v745 = vunpack.c.l.b16 %v616
    %v746 = vunpack.c.l.b16 %v617
    %v747 = vunpack.c.l.b16 %v618
    %v748 = vunpack.c.l.b16 %v619
    %v749 = vunpack.c.l.b16 %v620
    %v750 = vunpack.c.l.b16 %v621
    %v751 = vunpack.c.l.b16 %v622
    %v752 = vunpack.c.l.b16 %v623
    %v753 = vunpack.c.l.b16 %v624
    %v754 = vunpack.c.l.b16 %v625
    %v755 = vunpack.c.l.b16 %v626
    %v756 = vunpack.c.l.b16 %v627
    %v757 = vunpack.c.l.b16 %v628
    %v758 = vunpack.c.l.b16 %v629
    %v759 = vunpack.c.l.b16 %v630
    %v760 = vunpack.c.l.b16 %v631
    %v761 = vpack.c.b16 %v746, %v745
    %v762 = vpack.c.b16 %v748, %v747
    %v763 = vpack.c.b16 %v750, %v749
    %v764 = vpack.c.b16 %v752, %v751
    %v765 = vpack.c.b16 %v754, %v753
    %v766 = vpack.c.b16 %v756, %v755
    %v767 = vpack.c.b16 %v758, %v757
    %v768 = vpack.c.b16 %v760, %v759
    %777 = vmatprep.subr.bf16.mxu0 0
    %778 = vmatpush1.bf16.msra.mxu0 %v607
    %779 = vmatprep.subr.bf16.mxu0 0
    %780 = vmatpush1.bf16.msra.mxu0 %v608
    %781 = vmatprep.subr.bf16.mxu0 0
    %782 = vmatpush1.bf16.msra.mxu0 %v609
    %783 = vmatprep.subr.bf16.mxu0 0
    %784 = vmatpush1.bf16.msra.mxu0 %v610
    %785 = vmatprep.subr.bf16.mxu0 0
    %786 = vmatpush1.bf16.msra.mxu0 %v611
    %787 = vmatprep.subr.bf16.mxu0 0
    %788 = vmatpush1.bf16.msra.mxu0 %v612
    %789 = vmatprep.subr.bf16.mxu0 0
    %790 = vmatpush1.bf16.msra.mxu0 %v613
    %791 = vmatprep.subr.bf16.mxu0 0
    %792 = vmatpush1.bf16.msra.mxu0 %v614
    %793 = vmatprep.subr.bf16.mxu0 0
    %794 = vmatpush1.bf16.msra.mxu0 0
    %795 = vmatprep.subr.bf16.mxu0 0
    %796 = vmatpush1.bf16.msra.mxu0 0
    %797 = vmatprep.subr.bf16.mxu0 0
    %798 = vmatpush1.bf16.msra.mxu0 0
    %799 = vmatprep.subr.bf16.mxu0 0
    %800 = vmatpush1.bf16.msra.mxu0 0
    %801 = vmatprep.subr.bf16.mxu0 0
    %802 = vmatpush1.bf16.msra.mxu0 0
    %803 = vmatprep.subr.bf16.mxu0 0
    %804 = vmatpush1.bf16.msra.mxu0 0
    %805 = vmatprep.subr.bf16.mxu0 0
    %806 = vmatpush1.bf16.msra.mxu0 0
    %807 = vmatprep.subr.bf16.mxu0 0
    %808 = vmatpush1.bf16.msra.mxu0 0
    %809 = vmatprep.mubr.bf16.mxu0 0
    %810 = vmatmul.mubr.bf16.gmra.mrb[0].mxu0 %v761
    %v811 = vpop.f32.mrb[0].mxu0
    %v812 = vadd.f32 %v652, %v811
    %v813 = vpop.f32.mrb[0].mxu0
    %v814 = vpop.f32.mrb[0].mxu0
    %v815 = vadd.f32 %v657, %v814
    %v816 = vpop.f32.mrb[0].mxu0
    %817 = vmatprep.mubr.bf16.mxu0 0
    %818 = vmatmul.mubr.bf16.gmra.mrb[0].mxu0 %v762
    %v819 = vpop.f32.mrb[0].mxu0
    %v820 = vadd.f32 %v662, %v819
    %v821 = vpop.f32.mrb[0].mxu0
    %v822 = vpop.f32.mrb[0].mxu0
    %v823 = vadd.f32 %v667, %v822
    %v824 = vpop.f32.mrb[0].mxu0
    %825 = vmatprep.mubr.bf16.mxu0 0
    %826 = vmatmul.mubr.bf16.gmra.mrb[0].mxu0 %v763
    %v827 = vpop.f32.mrb[0].mxu0
    %v828 = vadd.f32 %v672, %v827
    %v829 = vpop.f32.mrb[0].mxu0
    %v830 = vpop.f32.mrb[0].mxu0
    %v831 = vadd.f32 %v677, %v830
    %v832 = vpop.f32.mrb[0].mxu0
    %833 = vmatprep.mubr.bf16.mxu0 0
    %834 = vmatmul.mubr.bf16.gmra.mrb[0].mxu0 %v764
    %v835 = vpop.f32.mrb[0].mxu0
    %v836 = vadd.f32 %v682, %v835
    %v837 = vpop.f32.mrb[0].mxu0
    %v838 = vpop.f32.mrb[0].mxu0
    %v839 = vadd.f32 %v687, %v838
    %v840 = vpop.f32.mrb[0].mxu0
    %841 = vmatprep.mubr.bf16.mxu0 0
    %842 = vmatmul.mubr.bf16.gmra.mrb[0].mxu0 %v765
    %v843 = vpop.f32.mrb[0].mxu0
    %v844 = vadd.f32 %v692, %v843
    %v845 = vpop.f32.mrb[0].mxu0
    %v846 = vpop.f32.mrb[0].mxu0
    %v847 = vadd.f32 %v697, %v846
    %v848 = vpop.f32.mrb[0].mxu0
    %849 = vmatprep.mubr.bf16.mxu0 0
    %850 = vmatmul.mubr.bf16.gmra.mrb[0].mxu0 %v766
    %v851 = vpop.f32.mrb[0].mxu0
    %v852 = vadd.f32 %v702, %v851
    %v853 = vpop.f32.mrb[0].mxu0
    %v854 = vpop.f32.mrb[0].mxu0
    %v855 = vadd.f32 %v707, %v854
    %v856 = vpop.f32.mrb[0].mxu0
    %857 = vmatprep.mubr.bf16.mxu0 0
    %858 = vmatmul.mubr.bf16.gmra.mrb[0].mxu0 %v767
    %v859 = vpop.f32.mrb[0].mxu0
    %v860 = vadd.f32 %v712, %v859
    %v861 = vpop.f32.mrb[0].mxu0
    %v862 = vpop.f32.mrb[0].mxu0
    %v863 = vadd.f32 %v717, %v862
    %v864 = vpop.f32.mrb[0].mxu0
    %865 = vmatprep.mubr.bf16.mxu0 0
    %866 = vmatmul.mubr.bf16.gmra.mrb[0].mxu0 %v768
    %v867 = vpop.f32.mrb[0].mxu0
    %v868 = vadd.f32 %v722, %v867
    %v869 = vpop.f32.mrb[0].mxu0
    %v870 = vpop.f32.mrb[0].mxu0
    %v871 = vadd.f32 %v727, %v870
    %v872 = vpop.f32.mrb[0].mxu0
    %873 = vdwg.mxu0
    %v874 = vmax.f32 %v812, 0.0
    %v875 = vmax.f32 %v815, 0.0
    %v876 = vmax.f32 %v820, 0.0
    %v877 = vmax.f32 %v823, 0.0
    %v878 = vmax.f32 %v828, 0.0
    %v879 = vmax.f32 %v831, 0.0
    %v880 = vmax.f32 %v836, 0.0
    %v881 = vmax.f32 %v839, 0.0
    %v882 = vmax.f32 %v844, 0.0
    %v883 = vmax.f32 %v847, 0.0
    %v884 = vmax.f32 %v852, 0.0
    %v885 = vmax.f32 %v855, 0.0
    %v886 = vmax.f32 %v860, 0.0
    %v887 = vmax.f32 %v863, 0.0
    %v888 = vmax.f32 %v868, 0.0
    %v889 = vmax.f32 %v871, 0.0
    %v890 = vpack.c.bf16 %v875, %v874
    %v891 = vpack.c.bf16 %v877, %v876
    %v892 = vpack.c.bf16 %v879, %v878
    %v893 = vpack.c.bf16 %v881, %v880
    %v894 = vpack.c.bf16 %v883, %v882
    %v895 = vpack.c.bf16 %v885, %v884
    %v896 = vpack.c.bf16 %v887, %v886
    %v897 = vpack.c.bf16 %v889, %v888
    %s898 = scalar_lea.vmem %s2, 128
    %v899 = vld [vmem:[%s898] sm:$0xf]
    %v900 = vld [vmem:[%s898 + $0x4] sm:$0xf]
    %v901 = vld [vmem:[%s898 + $0x8] sm:$0xf]
    %v902 = vld [vmem:[%s898 + $0xc] sm:$0xf]
    %v903 = vld [vmem:[%s898 + $0x10] sm:$0xf]
    %v904 = vld [vmem:[%s898 + $0x14] sm:$0xf]
    %v905 = vld [vmem:[%s898 + $0x18] sm:$0xf]
    %v906 = vld [vmem:[%s898 + $0x1c] sm:$0xf]
    %v907 = vld [vmem:[%s898 + $0x20] sm:$0xf]
    %v908 = vld [vmem:[%s898 + $0x24] sm:$0xf]
    %v909 = vld [vmem:[%s898 + $0x28] sm:$0xf]
    %v910 = vld [vmem:[%s898 + $0x2c] sm:$0xf]
    %v911 = vld [vmem:[%s898 + $0x30] sm:$0xf]
    %v912 = vld [vmem:[%s898 + $0x34] sm:$0xf]
    %v913 = vld [vmem:[%s898 + $0x38] sm:$0xf]
    %v914 = vld [vmem:[%s898 + $0x3c] sm:$0xf]
    %s915 = scalar_lea.vmem %s3, 384
    %v916 = vld [vmem:[%s915] sm:$0xff]
    %v917 = vld [vmem:[%s915 + $0x8] sm:$0xff]
    %v918 = vld [vmem:[%s915 + $0x10] sm:$0xff]
    %v919 = vld [vmem:[%s915 + $0x18] sm:$0xff]
    %v920 = vld [vmem:[%s915 + $0x20] sm:$0xff]
    %v921 = vld [vmem:[%s915 + $0x28] sm:$0xff]
    %v922 = vld [vmem:[%s915 + $0x30] sm:$0xff]
    %v923 = vld [vmem:[%s915 + $0x38] sm:$0xff]
    %v924 = vld [vmem:[%s915 + $0x40] sm:$0xff]
    %v925 = vld [vmem:[%s915 + $0x48] sm:$0xff]
    %v926 = vld [vmem:[%s915 + $0x50] sm:$0xff]
    %v927 = vld [vmem:[%s915 + $0x58] sm:$0xff]
    %v928 = vld [vmem:[%s915 + $0x60] sm:$0xff]
    %v929 = vld [vmem:[%s915 + $0x68] sm:$0xff]
    %v930 = vld [vmem:[%s915 + $0x70] sm:$0xff]
    %v931 = vld [vmem:[%s915 + $0x78] sm:$0xff]
    %933 = vset.pattern.permute.xlu0 0
    %934 = vperm.xlu0 %933, %v916
    %v935 = vpop.permute.xlu0 %934
    %938 = vset.pattern.permute.xlu0 0
    %939 = vperm.xlu0 %938, %v917
    %v940 = vpop.permute.xlu0 %939
    %943 = vset.pattern.permute.xlu0 0
    %944 = vperm.xlu0 %943, %v918
    %v945 = vpop.permute.xlu0 %944
    %948 = vset.pattern.permute.xlu0 0
    %949 = vperm.xlu0 %948, %v919
    %v950 = vpop.permute.xlu0 %949
    %953 = vset.pattern.permute.xlu0 0
    %954 = vperm.xlu0 %953, %v920
    %v955 = vpop.permute.xlu0 %954
    %958 = vset.pattern.permute.xlu0 0
    %959 = vperm.xlu0 %958, %v921
    %v960 = vpop.permute.xlu0 %959
    %963 = vset.pattern.permute.xlu0 0
    %964 = vperm.xlu0 %963, %v922
    %v965 = vpop.permute.xlu0 %964
    %968 = vset.pattern.permute.xlu0 0
    %969 = vperm.xlu0 %968, %v923
    %v970 = vpop.permute.xlu0 %969
    %973 = vset.pattern.permute.xlu0 0
    %974 = vperm.xlu0 %973, %v924
    %v975 = vpop.permute.xlu0 %974
    %978 = vset.pattern.permute.xlu0 0
    %979 = vperm.xlu0 %978, %v925
    %v980 = vpop.permute.xlu0 %979
    %983 = vset.pattern.permute.xlu0 0
    %984 = vperm.xlu0 %983, %v926
    %v985 = vpop.permute.xlu0 %984
    %988 = vset.pattern.permute.xlu0 0
    %989 = vperm.xlu0 %988, %v927
    %v990 = vpop.permute.xlu0 %989
    %993 = vset.pattern.permute.xlu0 0
    %994 = vperm.xlu0 %993, %v928
    %v995 = vpop.permute.xlu0 %994
    %998 = vset.pattern.permute.xlu0 0
    %999 = vperm.xlu0 %998, %v929
    %v1000 = vpop.permute.xlu0 %999
    %1003 = vset.pattern.permute.xlu0 0
    %1004 = vperm.xlu0 %1003, %v930
    %v1005 = vpop.permute.xlu0 %1004
    %1008 = vset.pattern.permute.xlu0 0
    %1009 = vperm.xlu0 %1008, %v931
    %v1010 = vpop.permute.xlu0 %1009
    %v1028 = vunpack.c.l.b16 %v899
    %v1029 = vunpack.c.l.b16 %v900
    %v1030 = vunpack.c.l.b16 %v901
    %v1031 = vunpack.c.l.b16 %v902
    %v1032 = vunpack.c.l.b16 %v903
    %v1033 = vunpack.c.l.b16 %v904
    %v1034 = vunpack.c.l.b16 %v905
    %v1035 = vunpack.c.l.b16 %v906
    %v1036 = vunpack.c.l.b16 %v907
    %v1037 = vunpack.c.l.b16 %v908
    %v1038 = vunpack.c.l.b16 %v909
    %v1039 = vunpack.c.l.b16 %v910
    %v1040 = vunpack.c.l.b16 %v911
    %v1041 = vunpack.c.l.b16 %v912
    %v1042 = vunpack.c.l.b16 %v913
    %v1043 = vunpack.c.l.b16 %v914
    %v1044 = vpack.c.b16 %v1029, %v1028
    %v1045 = vpack.c.b16 %v1031, %v1030
    %v1046 = vpack.c.b16 %v1033, %v1032
    %v1047 = vpack.c.b16 %v1035, %v1034
    %v1048 = vpack.c.b16 %v1037, %v1036
    %v1049 = vpack.c.b16 %v1039, %v1038
    %v1050 = vpack.c.b16 %v1041, %v1040
    %v1051 = vpack.c.b16 %v1043, %v1042
    %1060 = vmatprep.subr.bf16.mxu0 0
    %1061 = vmatpush1.bf16.msra.mxu0 %v890
    %1062 = vmatprep.subr.bf16.mxu0 0
    %1063 = vmatpush1.bf16.msra.mxu0 %v891
    %1064 = vmatprep.subr.bf16.mxu0 0
    %1065 = vmatpush1.bf16.msra.mxu0 %v892
    %1066 = vmatprep.subr.bf16.mxu0 0
    %1067 = vmatpush1.bf16.msra.mxu0 %v893
    %1068 = vmatprep.subr.bf16.mxu0 0
    %1069 = vmatpush1.bf16.msra.mxu0 %v894
    %1070 = vmatprep.subr.bf16.mxu0 0
    %1071 = vmatpush1.bf16.msra.mxu0 %v895
    %1072 = vmatprep.subr.bf16.mxu0 0
    %1073 = vmatpush1.bf16.msra.mxu0 %v896
    %1074 = vmatprep.subr.bf16.mxu0 0
    %1075 = vmatpush1.bf16.msra.mxu0 %v897
    %1076 = vmatprep.subr.bf16.mxu0 0
    %1077 = vmatpush1.bf16.msra.mxu0 0
    %1078 = vmatprep.subr.bf16.mxu0 0
    %1079 = vmatpush1.bf16.msra.mxu0 0
    %1080 = vmatprep.subr.bf16.mxu0 0
    %1081 = vmatpush1.bf16.msra.mxu0 0
    %1082 = vmatprep.subr.bf16.mxu0 0
    %1083 = vmatpush1.bf16.msra.mxu0 0
    %1084 = vmatprep.subr.bf16.mxu0 0
    %1085 = vmatpush1.bf16.msra.mxu0 0
    %1086 = vmatprep.subr.bf16.mxu0 0
    %1087 = vmatpush1.bf16.msra.mxu0 0
    %1088 = vmatprep.subr.bf16.mxu0 0
    %1089 = vmatpush1.bf16.msra.mxu0 0
    %1090 = vmatprep.subr.bf16.mxu0 0
    %1091 = vmatpush1.bf16.msra.mxu0 0
    %1092 = vmatprep.mubr.bf16.mxu0 0
    %1093 = vmatmul.mubr.bf16.gmra.mrb[0].mxu0 %v1044
    %v1094 = vpop.f32.mrb[0].mxu0
    %v1095 = vadd.f32 %v935, %v1094
    %v1096 = vpop.f32.mrb[0].mxu0
    %v1097 = vpop.f32.mrb[0].mxu0
    %v1098 = vadd.f32 %v940, %v1097
    %v1099 = vpop.f32.mrb[0].mxu0
    %1100 = vmatprep.mubr.bf16.mxu0 0
    %1101 = vmatmul.mubr.bf16.gmra.mrb[0].mxu0 %v1045
    %v1102 = vpop.f32.mrb[0].mxu0
    %v1103 = vadd.f32 %v945, %v1102
    %v1104 = vpop.f32.mrb[0].mxu0
    %v1105 = vpop.f32.mrb[0].mxu0
    %v1106 = vadd.f32 %v950, %v1105
    %v1107 = vpop.f32.mrb[0].mxu0
    %1108 = vmatprep.mubr.bf16.mxu0 0
    %1109 = vmatmul.mubr.bf16.gmra.mrb[0].mxu0 %v1046
    %v1110 = vpop.f32.mrb[0].mxu0
    %v1111 = vadd.f32 %v955, %v1110
    %v1112 = vpop.f32.mrb[0].mxu0
    %v1113 = vpop.f32.mrb[0].mxu0
    %v1114 = vadd.f32 %v960, %v1113
    %v1115 = vpop.f32.mrb[0].mxu0
    %1116 = vmatprep.mubr.bf16.mxu0 0
    %1117 = vmatmul.mubr.bf16.gmra.mrb[0].mxu0 %v1047
    %v1118 = vpop.f32.mrb[0].mxu0
    %v1119 = vadd.f32 %v965, %v1118
    %v1120 = vpop.f32.mrb[0].mxu0
    %v1121 = vpop.f32.mrb[0].mxu0
    %v1122 = vadd.f32 %v970, %v1121
    %v1123 = vpop.f32.mrb[0].mxu0
    %1124 = vmatprep.mubr.bf16.mxu0 0
    %1125 = vmatmul.mubr.bf16.gmra.mrb[0].mxu0 %v1048
    %v1126 = vpop.f32.mrb[0].mxu0
    %v1127 = vadd.f32 %v975, %v1126
    %v1128 = vpop.f32.mrb[0].mxu0
    %v1129 = vpop.f32.mrb[0].mxu0
    %v1130 = vadd.f32 %v980, %v1129
    %v1131 = vpop.f32.mrb[0].mxu0
    %1132 = vmatprep.mubr.bf16.mxu0 0
    %1133 = vmatmul.mubr.bf16.gmra.mrb[0].mxu0 %v1049
    %v1134 = vpop.f32.mrb[0].mxu0
    %v1135 = vadd.f32 %v985, %v1134
    %v1136 = vpop.f32.mrb[0].mxu0
    %v1137 = vpop.f32.mrb[0].mxu0
    %v1138 = vadd.f32 %v990, %v1137
    %v1139 = vpop.f32.mrb[0].mxu0
    %1140 = vmatprep.mubr.bf16.mxu0 0
    %1141 = vmatmul.mubr.bf16.gmra.mrb[0].mxu0 %v1050
    %v1142 = vpop.f32.mrb[0].mxu0
    %v1143 = vadd.f32 %v995, %v1142
    %v1144 = vpop.f32.mrb[0].mxu0
    %v1145 = vpop.f32.mrb[0].mxu0
    %v1146 = vadd.f32 %v1000, %v1145
    %v1147 = vpop.f32.mrb[0].mxu0
    %1148 = vmatprep.mubr.bf16.mxu0 0
    %1149 = vmatmul.mubr.bf16.gmra.mrb[0].mxu0 %v1051
    %v1150 = vpop.f32.mrb[0].mxu0
    %v1151 = vadd.f32 %v1005, %v1150
    %v1152 = vpop.f32.mrb[0].mxu0
    %v1153 = vpop.f32.mrb[0].mxu0
    %v1154 = vadd.f32 %v1010, %v1153
    %v1155 = vpop.f32.mrb[0].mxu0
    %1156 = vdwg.mxu0
    %v1157 = vmax.f32 %v1095, 0.0
    %v1158 = vmax.f32 %v1098, 0.0
    %v1159 = vmax.f32 %v1103, 0.0
    %v1160 = vmax.f32 %v1106, 0.0
    %v1161 = vmax.f32 %v1111, 0.0
    %v1162 = vmax.f32 %v1114, 0.0
    %v1163 = vmax.f32 %v1119, 0.0
    %v1164 = vmax.f32 %v1122, 0.0
    %v1165 = vmax.f32 %v1127, 0.0
    %v1166 = vmax.f32 %v1130, 0.0
    %v1167 = vmax.f32 %v1135, 0.0
    %v1168 = vmax.f32 %v1138, 0.0
    %v1169 = vmax.f32 %v1143, 0.0
    %v1170 = vmax.f32 %v1146, 0.0
    %v1171 = vmax.f32 %v1151, 0.0
    %v1172 = vmax.f32 %v1154, 0.0
    %v1173 = vpack.c.bf16 %v1158, %v1157
    %v1174 = vpack.c.bf16 %v1160, %v1159
    %v1175 = vpack.c.bf16 %v1162, %v1161
    %v1176 = vpack.c.bf16 %v1164, %v1163
    %v1177 = vpack.c.bf16 %v1166, %v1165
    %v1178 = vpack.c.bf16 %v1168, %v1167
    %v1179 = vpack.c.bf16 %v1170, %v1169
    %v1180 = vpack.c.bf16 %v1172, %v1171
    %s1181 = scalar_lea.vmem %s2, 192
    %v1182 = vld [vmem:[%s1181] sm:$0xf]
    %1183 = vmatprep.subr.bf16.mxu0 0
    %1184 = vmatpush1.bf16.msra.mxu0 %v1173
    %1185 = vmatprep.subr.bf16.mxu0 0
    %1186 = vmatpush1.bf16.msra.mxu0 %v1174
    %1187 = vmatprep.subr.bf16.mxu0 0
    %1188 = vmatpush1.bf16.msra.mxu0 %v1175
    %1189 = vmatprep.subr.bf16.mxu0 0
    %1190 = vmatpush1.bf16.msra.mxu0 %v1176
    %1191 = vmatprep.subr.bf16.mxu0 0
    %1192 = vmatpush1.bf16.msra.mxu0 %v1177
    %1193 = vmatprep.subr.bf16.mxu0 0
    %1194 = vmatpush1.bf16.msra.mxu0 %v1178
    %1195 = vmatprep.subr.bf16.mxu0 0
    %1196 = vmatpush1.bf16.msra.mxu0 %v1179
    %1197 = vmatprep.subr.bf16.mxu0 0
    %1198 = vmatpush1.bf16.msra.mxu0 %v1180
    %1199 = vmatprep.subr.bf16.mxu0 0
    %1200 = vmatpush1.bf16.msra.mxu0 0
    %1201 = vmatprep.subr.bf16.mxu0 0
    %1202 = vmatpush1.bf16.msra.mxu0 0
    %1203 = vmatprep.subr.bf16.mxu0 0
    %1204 = vmatpush1.bf16.msra.mxu0 0
    %1205 = vmatprep.subr.bf16.mxu0 0
    %1206 = vmatpush1.bf16.msra.mxu0 0
    %1207 = vmatprep.subr.bf16.mxu0 0
    %1208 = vmatpush1.bf16.msra.mxu0 0
    %1209 = vmatprep.subr.bf16.mxu0 0
    %1210 = vmatpush1.bf16.msra.mxu0 0
    %1211 = vmatprep.subr.bf16.mxu0 0
    %1212 = vmatpush1.bf16.msra.mxu0 0
    %1213 = vmatprep.subr.bf16.mxu0 0
    %1214 = vmatpush1.bf16.msra.mxu0 0
    %1215 = vmatprep.mubr.bf16.mxu0 0
    %1216 = vmatmul.mubr.bf16.gmra.mrb[0].mxu0 %v1182
    %v1217 = vpop.f32.mrb[0].mxu0
    %v1218 = vadd.f32 0.0, %v1217
    %v1219 = vpop.f32.mrb[0].mxu0
    %v1220 = vpop.f32.mrb[0].mxu0
    %v1221 = vpop.f32.mrb[0].mxu0
    %1222 = vdwg.mxu0
    %s1223 = scalar_lea.vmem %s3, 512
    %v1224 = vld [vmem:[%s1223] sm:$0xff]
    %1226 = vset.pattern.permute.xlu0 0
    %1227 = vperm.xlu0 %1226, %v1224
    %v1228 = vpop.permute.xlu0 %1227
    %v1230 = vadd.f32 %v1218, %v1228
    %v1231 = vmul.f32 %v1230, 0.5
    %v1232 = vtanh.pop %v1231
    %v1233 = vmul.f32 %v1232, 0.5
    %v1234 = vadd.f32 %v1233, 0.5
    %1235 = vst [vmem:[#allocation2] sm:$0x1] %v1234
    // Predicated region
    $region18: #{tpu_custom_call.1} parent=1 // pred_check
      _
    $region19: #{tpu_custom_call.1} parent=1 // pred_check_branch
      %1237 = sbr.rel (0) target = $region21
    $region20: #{tpu_custom_call.1} parent=1 // pred_region
      %s1239 = ssub.s32 16, 16
      %1240 = vsyncadd [#allocation3], %s1239
      %s1242 = sshll.u32 [#allocation2], 4
      %s1243 = int_to_ptr.vmem [resolvable:$true] %s1242
      %1245 = dma.vmem_to_hbm [thread:$0]  %s1243, 16, %s4, [#allocation3]
    $region21: #{tpu_custom_call.1} parent=1 // pred_fallthru
      _
    // Predicated region
    $region22: #{tpu_custom_call.1} parent=1 // pred_check
      _
    $region23: #{tpu_custom_call.1} parent=1 // pred_check_branch
      %1247 = sbr.rel (0) target = $region25
    $region24: #{tpu_custom_call.1} parent=1 // pred_region
      %1248 = dma.done [#allocation3], 16
    $region25: #{tpu_custom_call.1} parent=1 // pred_fallthru
      _
    %1249 = vsyncpa [#allocation3], 1

</llo_original>
